<compile_context>
chip_gen: v7x
topology: tpu7x:2x2x1
jax: 0.10.0
libtpu: 0.0.40
codegen_flags: <defaults>
</compile_context>

<pallas_src>
import functools
import math

import numpy as np
import jax
import jax.numpy as jnp
from jax import lax
from jax.experimental import pallas as pl
from jax.experimental.pallas import tpu as pltpu

# ---- small-shape config consistent with the module (emb_dim % num_heads == 0) ----
BATCH = 2
SEQ = 8
EMB = 32          # stands in for CFG.emb_dim = 500
HID = EMB // 2    # mlp hidden = emb_dim // 2
LN_EPS = 1e-5

_LANE = 128


def _round_up(x, m):
    return ((x + m - 1) // m) * m


E_PAD = _round_up(EMB, _LANE)     # 32  -> 128   (real 500 -> 512)
HID_PAD = _round_up(HID, _LANE)   # 16  -> 128   (real 250 -> 256)


def e_kernel(x_ref, rowp_ref, w1_ref, w2_ref, out_ref, *, true_e, hid_pad):
    """One (TR, E_pad) row tile of LayerNorm(x) + MLP(LayerNorm(x)).

    x_ref:    (TR, E_pad)     f32, lanes >= true_e are zero
    rowp_ref: (4,  E_pad)     f32 rows = [gamma, beta, b1 (first hid_pad lanes), b2]
    w1_ref:   (E_pad, HID_pad) bf16 (pre-transposed, zero-padded)
    w2_ref:   (HID_pad, E_pad) bf16 (pre-transposed, zero-padded)
    out_ref:  (TR, E_pad)     f32
    """
    x = x_ref[...]                                     # (TR, E_pad) f32

    gamma = rowp_ref[0:1, :]                           # (1, E_pad)
    beta = rowp_ref[1:2, :]
    b1 = rowp_ref[2:3, :hid_pad]                       # (1, HID_pad) static lane slice
    b2 = rowp_ref[3:4, :]

    # ---------------- y = LayerNorm(x) over the TRUE E lanes ----------------
    inv_e = jnp.float32(1.0 / true_e)
    lane = lax.broadcasted_iota(jnp.int32, x.shape, 1)
    valid = lane < true_e

    mu = jnp.sum(x, axis=-1, keepdims=True) * inv_e            # pad lanes are zero
    diff = jnp.where(valid, x - mu, 0.0)                       # mask pad lanes
    var = jnp.sum(diff * diff, axis=-1, keepdims=True) * inv_e  # biased var (torch LN)
    y = diff * lax.rsqrt(var + LN_EPS) * gamma + beta          # pad lanes stay exactly 0

    # ---------------- out = y + MLP(y) ----------------
    # bf16 operands into the MXU, f32 accumulation; zero-padded rows/cols of the
    # weights keep the padded lanes of h1/h2 exactly zero.
    h1 = jnp.dot(y.astype(jnp.bfloat16), w1_ref[...],
                 preferred_element_type=jnp.float32) + b1
    # exact GELU (torch nn.GELU default): 0.5*x*(1+erf(x/sqrt(2)))
    h1 = 0.5 * h1 * (1.0 + lax.erf(h1 * (1.0 / math.sqrt(2.0))))
    h2 = jnp.dot(h1.astype(jnp.bfloat16), w2_ref[...],
                 preferred_element_type=jnp.float32) + b2

    out_ref[...] = (y + h2).astype(out_ref.dtype)


def e_forward(ee, mask, params, *, row_tile=256):
    """ee: (B, S, E) f32, mask: (B, 1, S) bool (True = pad). Returns (B, S, E) f32.

    mask only feeds the MHA branch, which does not influence the returned value
    of the reference forward, so it is accepted for API fidelity and ignored.
    """
    del mask
    B, S, E = ee.shape
    R = B * S

    tr = max(8, _round_up(row_tile, 8))
    r_pad = _round_up(R, tr)

    # Flatten to rows and zero-pad rows + lanes for a lane-dense layout.
    x2d = ee.reshape(R, E)
    x2d = jnp.pad(x2d, ((0, r_pad - R), (0, E_PAD - E)))

    rowp = params["row_params"]                        # (4, E_PAD) f32
    w1t = params["w1T"]                                # (E_PAD, HID_PAD) bf16
    w2t = params["w2T"]                                # (HID_PAD, E_PAD) bf16

    kernel = functools.partial(e_kernel, true_e=E, hid_pad=HID_PAD)

    out2d = pl.pallas_call(
        kernel,
        grid=(r_pad // tr,),
        in_specs=[
            pl.BlockSpec((tr, E_PAD), lambda i: (i, 0)),          # row tiles, pipelined
            pl.BlockSpec(rowp.shape, lambda i: (0, 0)),           # grid-invariant, resident
            pl.BlockSpec(w1t.shape, lambda i: (0, 0)),
            pl.BlockSpec(w2t.shape, lambda i: (0, 0)),
        ],
        out_specs=pl.BlockSpec((tr, E_PAD), lambda i: (i, 0)),
        out_shape=jax.ShapeDtypeStruct((r_pad, E_PAD), jnp.float32),
        compiler_params=pltpu.CompilerParams(
            dimension_semantics=("parallel",),                    # shard rows across TCs (v7x)
        ),
    )(x2d, rowp, w1t, w2t)

    return out2d[:R, :E].reshape(B, S, E)


def make_params(key):
    ks = jax.random.split(key, 4)
    std = 0.02
    w1 = std * jax.random.normal(ks[0], (HID, EMB), jnp.float32)   # torch Linear(E, HID).weight
    b1 = std * jax.random.normal(ks[1], (HID,), jnp.float32)
    w2 = std * jax.random.normal(ks[2], (EMB, HID), jnp.float32)   # torch Linear(HID, E).weight
    b2 = std * jax.random.normal(ks[3], (EMB,), jnp.float32)

    gamma = jnp.ones((EMB,), jnp.float32)
    beta = jnp.zeros((EMB,), jnp.float32)

    # pack all per-lane row params into one lane-dense slab: [gamma; beta; b1; b2]
    def pad_lane(v, n):
        return jnp.zeros((n,), jnp.float32).at[: v.shape[0]].set(v)

    row_params = jnp.stack(
        [pad_lane(gamma, E_PAD), pad_lane(beta, E_PAD),
         pad_lane(b1, E_PAD), pad_lane(b2, E_PAD)], axis=0)        # (4, E_PAD)

    # pre-transposed + zero-padded + bf16 so the kernel computes x @ W + b densely
    w1t = jnp.zeros((E_PAD, HID_PAD), jnp.float32).at[:EMB, :HID].set(w1.T)
    w2t = jnp.zeros((HID_PAD, E_PAD), jnp.float32).at[:HID, :EMB].set(w2.T)

    return {
        "row_params": row_params,
        "w1T": w1t.astype(jnp.bfloat16),
        "w2T": w2t.astype(jnp.bfloat16),
        # raw copies kept for the pure-JAX references
        "_w1": w1, "_b1": b1, "_w2": w2, "_b2": b2,
        "_gamma": gamma, "_beta": beta,
    }


def _layernorm(ee, p):
    mu = jnp.mean(ee, axis=-1, keepdims=True)
    var = jnp.mean((ee - mu) ** 2, axis=-1, keepdims=True)
    return (ee - mu) / jnp.sqrt(var + LN_EPS) * p["_gamma"] + p["_beta"]


def ref_forward_f32(ee, mask, p):
    """Pure-JAX f32 reference mirroring the torch forward's returned value.

    In the torch module, `out = ee + attn_output` is immediately overwritten by
    `out = self.ln(ee)`, so the MHA result never reaches the output; only the
    live path is reproduced.
    """
    del mask
    y = _layernorm(ee, p)
    h1 = jax.nn.gelu(y @ p["_w1"].T + p["_b1"], approximate=False)
    return y + h1 @ p["_w2"].T + p["_b2"]


def ref_forward_bf16_matmul(ee, mask, p):
    """Same live path, but with bf16 matmul operands (matches kernel numerics)."""
    del mask
    y = _layernorm(ee, p)
    h1 = jnp.dot(y.astype(jnp.bfloat16), p["_w1"].T.astype(jnp.bfloat16),
                 preferred_element_type=jnp.float32) + p["_b1"]
    h1 = jax.nn.gelu(h1, approximate=False)
    h2 = jnp.dot(h1.astype(jnp.bfloat16), p["_w2"].T.astype(jnp.bfloat16),
                 preferred_element_type=jnp.float32) + p["_b2"]
    return y + h2


if __name__ == "__main__":
    root = jax.random.PRNGKey(0)
    k_ee, k_p = jax.random.split(root)

    ee = jax.random.normal(k_ee, (BATCH, SEQ, EMB), jnp.float32)
    # key_padding_mask: last positions padded (True = ignore); unused by the live output path.
    lengths = jnp.array([SEQ, SEQ - 3], dtype=jnp.int32)
    mask = (jnp.arange(SEQ)[None, :] >= lengths[:, None]).reshape(BATCH, 1, SEQ)

    params = make_params(k_p)

    # small row tile at toy size so the grid actually has >1 step (exercises
    # the pipelined / parallel row axis); use row_tile>=256 at real shapes.
    out = e_forward(ee, mask, params, row_tile=8)
    out = jax.block_until_ready(out)

    assert out.shape == (BATCH, SEQ, EMB) and out.dtype == jnp.float32

    # Tight check against a reference with identical (bf16-matmul) numerics.
    ref_m = ref_forward_bf16_matmul(ee, mask, params)
    np.testing.assert_allclose(np.asarray(out), np.asarray(ref_m), rtol=1e-4, atol=1e-4)

    # Semantic check against the full-f32 torch-equivalent reference.
    ref_f = ref_forward_f32(ee, mask, params)
    np.testing.assert_allclose(np.asarray(out), np.asarray(ref_f), rtol=2e-2, atol=2e-2)

    print("KERNEL_OK")
</pallas_src>

<mosaic_0001>
module attributes {stable_mosaic.version = 11 : i64} {
  func.func @e_kernel(%arg0: i32, %arg1: memref<8x128xf32, #tpu.memory_space<vmem>>, %arg2: memref<4x128xf32, #tpu.memory_space<vmem>>, %arg3: memref<128x128xbf16, #tpu.memory_space<vmem>>, %arg4: memref<128x128xbf16, #tpu.memory_space<vmem>>, %arg5: memref<8x128xf32, #tpu.memory_space<vmem>>) attributes {dimension_semantics = [#tpu.dimension_semantics<parallel>], iteration_bounds = array<i64: 2>, scalar_prefetch = 0 : i64, scratch_operands = 0 : i64, tpu.core_type = #tpu.core_type<tc>, window_params = [{transform_indices = @transform_0, window_bounds = array<i64: 8, 128>}, {pipeline_mode = #tpu.pipeline_mode<synchronous>, transform_indices = @transform_1, window_bounds = array<i64: 4, 128>}, {pipeline_mode = #tpu.pipeline_mode<synchronous>, transform_indices = @transform_2, window_bounds = array<i64: 128, 128>}, {pipeline_mode = #tpu.pipeline_mode<synchronous>, transform_indices = @transform_3, window_bounds = array<i64: 128, 128>}, {transform_indices = @transform_4, window_bounds = array<i64: 8, 128>}]} {
    %c0 = arith.constant 0 : index
    %c0_0 = arith.constant 0 : index
    %0 = vector.load %arg1[%c0, %c0_0] : memref<8x128xf32, #tpu.memory_space<vmem>>, vector<8x128xf32>
    %c0_1 = arith.constant 0 : index
    %c0_2 = arith.constant 0 : index
    %1 = vector.load %arg2[%c0_1, %c0_2] : memref<4x128xf32, #tpu.memory_space<vmem>>, vector<1x128xf32>
    %c1 = arith.constant 1 : index
    %c0_3 = arith.constant 0 : index
    %2 = vector.load %arg2[%c1, %c0_3] : memref<4x128xf32, #tpu.memory_space<vmem>>, vector<1x128xf32>
    %c2 = arith.constant 2 : index
    %c0_4 = arith.constant 0 : index
    %3 = vector.load %arg2[%c2, %c0_4] : memref<4x128xf32, #tpu.memory_space<vmem>>, vector<1x128xf32>
    %c3 = arith.constant 3 : index
    %c0_5 = arith.constant 0 : index
    %4 = vector.load %arg2[%c3, %c0_5] : memref<4x128xf32, #tpu.memory_space<vmem>>, vector<1x128xf32>
    %5 = tpu.iota {dimensions = array<i32: 1>} : vector<8x128xi32>
    %c32_i32 = arith.constant 32 : i32
    %6 = vector.broadcast %c32_i32 : i32 to vector<8x128xi32>
    %7 = arith.cmpi slt, %5, %6 : vector<8x128xi32>
    %cst = arith.constant dense<0.000000e+00> : vector<8xf32>
    %8 = vector.multi_reduction <add>, %0, %cst [1] : vector<8x128xf32> to vector<8xf32>
    %9 = vector.shape_cast %8 : vector<8xf32> to vector<8x1xf32>
    %cst_6 = arith.constant 3.125000e-02 : f32
    %10 = vector.broadcast %cst_6 : f32 to vector<8x1xf32>
    %11 = arith.mulf %9, %10 : vector<8x1xf32>
    %12 = vector.broadcast %11 : vector<8x1xf32> to vector<8x128xf32>
    %13 = arith.subf %0, %12 : vector<8x128xf32>
    %cst_7 = arith.constant 0.000000e+00 : f32
    %14 = vector.broadcast %cst_7 : f32 to vector<8x128xf32>
    %15 = arith.select %7, %13, %14 : vector<8x128xi1>, vector<8x128xf32>
    %16 = arith.mulf %15, %15 : vector<8x128xf32>
    %cst_8 = arith.constant dense<0.000000e+00> : vector<8xf32>
    %17 = vector.multi_reduction <add>, %16, %cst_8 [1] : vector<8x128xf32> to vector<8xf32>
    %18 = vector.shape_cast %17 : vector<8xf32> to vector<8x1xf32>
    %cst_9 = arith.constant 3.125000e-02 : f32
    %19 = vector.broadcast %cst_9 : f32 to vector<8x1xf32>
    %20 = arith.mulf %18, %19 : vector<8x1xf32>
    %cst_10 = arith.constant 9.99999974E-6 : f32
    %21 = vector.broadcast %cst_10 : f32 to vector<8x1xf32>
    %22 = arith.addf %20, %21 : vector<8x1xf32>
    %23 = math.rsqrt %22 : vector<8x1xf32>
    %24 = vector.broadcast %23 : vector<8x1xf32> to vector<8x128xf32>
    %25 = arith.mulf %15, %24 : vector<8x128xf32>
    %26 = vector.broadcast %1 : vector<1x128xf32> to vector<8x128xf32>
    %27 = arith.mulf %25, %26 : vector<8x128xf32>
    %28 = vector.broadcast %2 : vector<1x128xf32> to vector<8x128xf32>
    %29 = arith.addf %27, %28 : vector<8x128xf32>
    %30 = arith.truncf %29 : vector<8x128xf32> to vector<8x128xbf16>
    %c0_11 = arith.constant 0 : index
    %c0_12 = arith.constant 0 : index
    %31 = vector.load %arg3[%c0_11, %c0_12] : memref<128x128xbf16, #tpu.memory_space<vmem>>, vector<128x128xbf16>
    %cst_13 = arith.constant dense<0.000000e+00> : vector<8x128xf32>
    %32 = tpu.matmul %30, %31, %cst_13 {dimension_numbers = #tpu.dot_dimension_numbers<[1], [0], [0], [1], [0, 0, 1, 1], [], []>} : vector<8x128xbf16>, vector<128x128xbf16>, vector<8x128xf32> -> vector<8x128xf32>
    %33 = vector.broadcast %3 : vector<1x128xf32> to vector<8x128xf32>
    %34 = arith.addf %32, %33 : vector<8x128xf32>
    %cst_14 = arith.constant 5.000000e-01 : f32
    %35 = vector.broadcast %cst_14 : f32 to vector<8x128xf32>
    %36 = arith.mulf %35, %34 : vector<8x128xf32>
    %cst_15 = arith.constant 0.707106769 : f32
    %37 = vector.broadcast %cst_15 : f32 to vector<8x128xf32>
    %38 = arith.mulf %34, %37 : vector<8x128xf32>
    %39 = math.erf %38 : vector<8x128xf32>
    %cst_16 = arith.constant 1.000000e+00 : f32
    %40 = vector.broadcast %cst_16 : f32 to vector<8x128xf32>
    %41 = arith.addf %40, %39 : vector<8x128xf32>
    %42 = arith.mulf %36, %41 : vector<8x128xf32>
    %43 = arith.truncf %42 : vector<8x128xf32> to vector<8x128xbf16>
    %c0_17 = arith.constant 0 : index
    %c0_18 = arith.constant 0 : index
    %44 = vector.load %arg4[%c0_17, %c0_18] : memref<128x128xbf16, #tpu.memory_space<vmem>>, vector<128x128xbf16>
    %cst_19 = arith.constant dense<0.000000e+00> : vector<8x128xf32>
    %45 = tpu.matmul %43, %44, %cst_19 {dimension_numbers = #tpu.dot_dimension_numbers<[1], [0], [0], [1], [0, 0, 1, 1], [], []>} : vector<8x128xbf16>, vector<128x128xbf16>, vector<8x128xf32> -> vector<8x128xf32>
    %46 = vector.broadcast %4 : vector<1x128xf32> to vector<8x128xf32>
    %47 = arith.addf %45, %46 : vector<8x128xf32>
    %48 = arith.addf %29, %47 : vector<8x128xf32>
    %c0_20 = arith.constant 0 : index
    %c0_21 = arith.constant 0 : index
    %49 = vector.load %arg5[%c0_20, %c0_21] : memref<8x128xf32, #tpu.memory_space<vmem>>, vector<8x128xf32>
    tpu.vector_store %arg5[%c0_20, %c0_21], %48 {strides = array<i32>} : memref<8x128xf32, #tpu.memory_space<vmem>>, vector<8x128xf32>,
    return
  }
  func.func @transform_0(%arg0: i32) -> (i32, i32) {
    %c0_i32 = arith.constant 0 : i32
    %c0_i32_0 = arith.constant 0 : i32
    return %arg0, %c0_i32 : i32, i32
  }
  func.func @transform_1(%arg0: i32) -> (i32, i32) {
    %c0_i32 = arith.constant 0 : i32
    %c0_i32_0 = arith.constant 0 : i32
    %c0_i32_1 = arith.constant 0 : i32
    return %c0_i32, %c0_i32_0 : i32, i32
  }
  func.func @transform_2(%arg0: i32) -> (i32, i32) {
    %c0_i32 = arith.constant 0 : i32
    %c0_i32_0 = arith.constant 0 : i32
    %c0_i32_1 = arith.constant 0 : i32
    return %c0_i32, %c0_i32_0 : i32, i32
  }
  func.func @transform_3(%arg0: i32) -> (i32, i32) {
    %c0_i32 = arith.constant 0 : i32
    %c0_i32_0 = arith.constant 0 : i32
    %c0_i32_1 = arith.constant 0 : i32
    return %c0_i32, %c0_i32_0 : i32, i32
  }
  func.func @transform_4(%arg0: i32) -> (i32, i32) {
    %c0_i32 = arith.constant 0 : i32
    %c0_i32_0 = arith.constant 0 : i32
    return %arg0, %c0_i32 : i32, i32
  }
}

</mosaic_0001>

<llo_original>
// kernel: tpu_custom_call.1
$region0: #{tpu_custom_call.1}
  #allocation0 [shape = 'u32[]', space=smem, size = 0x4, offset = 0x4, fixed_abs, tag = 'smem constant byte address 0x4 - core index']
  #allocation1 [shape = 'u32[144,128]{1,0:T(1,128)}', space=vmem, size = 0x12000, scoped, tag = 'internal scratch']
  %s0 = inlined_call_operand.hbm [shape: f32[16,128], index: 0, kind: input, shape index: {}]
  %s1 = inlined_call_operand.hbm [shape: f32[4,128], index: 1, kind: input, shape index: {}]
  %s2 = inlined_call_operand.hbm [shape: bf16[128,128], index: 2, kind: input, shape index: {}]
  %s3 = inlined_call_operand.hbm [shape: bf16[128,128], index: 3, kind: input, shape index: {}]
  %s4 = inlined_call_operand.hbm [shape: f32[16,128], index: 4, kind: output, shape index: {}]
  %s5 = sld [smem:[#allocation0]]
  $region65: #{tpu_custom_call.1} parent=0
    _
  %s7 = ssub.s32 1, %s5
  %s8 = scalar_select 0, %s7, %s5
  $region1: #{tpu_custom_call.1} parent=0
    #allocation2 [shape = 'u8[8192]{0}', space=vmem, size = 0x2000, scoped, tag = 'input window, operand 0']
    #allocation3 [shape = 's32[2]{0}', space=sflag, size = 0x8, scoped, tag = 'scoped memory for tpu_custom_call.1']
    #allocation4 [shape = 's32[2]{0}', space=sflag, size = 0x8, scoped, tag = 'scoped memory for tpu_custom_call.1']
    #allocation5 [shape = 'u8[2048]{0}', space=vmem, size = 0x800, scoped, tag = 'input window, operand 1, single buffered']
    #allocation6 [shape = 's32[1]{0}', space=sflag, size = 0x4, scoped, tag = 'scoped memory for tpu_custom_call.1']
    #allocation7 [shape = 'u8[32768]{0}', space=vmem, size = 0x8000, scoped, tag = 'input window, operand 2, single buffered']
    #allocation8 [shape = 'u8[32768]{0}', space=vmem, size = 0x8000, scoped, tag = 'input window, operand 3, single buffered']
    #allocation9 [shape = 's32[1]{0}', space=sflag, size = 0x4, scoped, tag = 'scoped memory for tpu_custom_call.1']
    #allocation10 [shape = 'u8[8192]{0}', space=vmem, size = 0x2000, scoped, tag = 'output window, operand 0']
    %9 = vsyncpa [#allocation3], 0
    %s10 = scalar_lea.sflag [#allocation3], 1
    %11 = vsyncpa %s10, 0
    %12 = vsyncpa [#allocation6], 0
    %13 = vsyncpa [#allocation9], 0
    %14 = vsyncpa [#allocation4], 0
    %s15 = scalar_lea.sflag [#allocation4], 1
    %16 = vsyncpa %s15, 0
    loop: start=0, step=1, limit=4
    $region2: #{tpu_custom_call.1} parent=1 // loop_pre_header
      _
    $region3: #{tpu_custom_call.1} parent=1 // loop_header
      %s18 = sphi 0, %s22
      %p19 = scmp.ge.s32.totalorder %s18, 4
      %s28 = sphi 0, %s30
      %s31 = sphi 0, %s28
      %s32 = sphi 0, %s31
      %s48 = sphi 0, %s32
      %s52 = sphi 0, %s52
      %s54 = sphi 0, %s52
      %s55 = sphi 0, %s54
      %s69 = sphi 0, %s55
      %s73 = sphi 0, %s73
      %s75 = sphi 0, %s73
      %s76 = sphi 0, %s75
      %s90 = sphi 0, %s76
      %s94 = sphi 0, %s94
      %s96 = sphi 0, %s94
      %s97 = sphi 0, %s96
      %s111 = sphi 0, %s97
      %s117 = sphi 0, %s119
      %s120 = sphi 0, %s117
      %s121 = sphi 0, %s120
      %s137 = sphi 0, %s121
    $region4: #{tpu_custom_call.1} parent=1 // loop_header_branch
      %21 = sbr.rel (%p19) target = $region8
    $region5: #{tpu_custom_call.1} parent=1 // loop_body
      %s23 = ssub.s32 %s18, 1
      %s24 = ssub.s32 %s18, 2
      %s25 = sadd.s32 %s18, 1
      %s26 = ssub.s32 %s18, %s25
      %p27 = scmp.eq.s32.totalorder %s26, 0
      %s29 = sadd.s32 %s28, 1
      %s30 = scalar_select %p27, %s28, %s29
      %p33 = pneg %p27
      %p34 = scmp.eq.s32.totalorder %s18, 1
      %p35 = por %p33, %p34
      %p36 = scmp.ne.s32.totalorder %s28, %s31
      %p37 = scmp.eq.s32.totalorder %s18, 0
      %p38 = por %p36, %p37
      %p39 = scmp.ne.s32.totalorder %s28, %s31
      %p40 = scmp.eq.s32.totalorder %s23, 1
      %p41 = por %p39, %p40
      %p42 = scmp.ne.s32.totalorder %s31, %s32
      %p43 = scmp.eq.s32.totalorder %s23, 0
      %p44 = por %p42, %p43
      %p45 = scmp.ne.s32.totalorder %s31, %s32
      %p46 = scmp.eq.s32.totalorder %s24, 1
      %p47 = por %p45, %p46
      %p49 = scmp.ne.s32.totalorder %s32, %s48
      %p50 = scmp.eq.s32.totalorder %s24, 0
      %p51 = por %p49, %p50
      %s53 = sadd.s32 %s52, 1
      %p56 = scmp.eq.s32.totalorder %s18, 1
      %p57 = scmp.ne.s32.totalorder %s52, %s54
      %p58 = scmp.eq.s32.totalorder %s18, 0
      %p59 = por %p57, %p58
      %p60 = scmp.ne.s32.totalorder %s52, %s54
      %p61 = scmp.eq.s32.totalorder %s23, 1
      %p62 = por %p60, %p61
      %p63 = scmp.ne.s32.totalorder %s54, %s55
      %p64 = scmp.eq.s32.totalorder %s23, 0
      %p65 = por %p63, %p64
      %p66 = scmp.ne.s32.totalorder %s54, %s55
      %p67 = scmp.eq.s32.totalorder %s24, 1
      %p68 = por %p66, %p67
      %p70 = scmp.ne.s32.totalorder %s55, %s69
      %p71 = scmp.eq.s32.totalorder %s24, 0
      %p72 = por %p70, %p71
      %s74 = sadd.s32 %s73, 1
      %p77 = scmp.eq.s32.totalorder %s18, 1
      %p78 = scmp.ne.s32.totalorder %s73, %s75
      %p79 = scmp.eq.s32.totalorder %s18, 0
      %p80 = por %p78, %p79
      %p81 = scmp.ne.s32.totalorder %s73, %s75
      %p82 = scmp.eq.s32.totalorder %s23, 1
      %p83 = por %p81, %p82
      %p84 = scmp.ne.s32.totalorder %s75, %s76
      %p85 = scmp.eq.s32.totalorder %s23, 0
      %p86 = por %p84, %p85
      %p87 = scmp.ne.s32.totalorder %s75, %s76
      %p88 = scmp.eq.s32.totalorder %s24, 1
      %p89 = por %p87, %p88
      %p91 = scmp.ne.s32.totalorder %s76, %s90
      %p92 = scmp.eq.s32.totalorder %s24, 0
      %p93 = por %p91, %p92
      %s95 = sadd.s32 %s94, 1
      %p98 = scmp.eq.s32.totalorder %s18, 1
      %p99 = scmp.ne.s32.totalorder %s94, %s96
      %p100 = scmp.eq.s32.totalorder %s18, 0
      %p101 = por %p99, %p100
      %p102 = scmp.ne.s32.totalorder %s94, %s96
      %p103 = scmp.eq.s32.totalorder %s23, 1
      %p104 = por %p102, %p103
      %p105 = scmp.ne.s32.totalorder %s96, %s97
      %p106 = scmp.eq.s32.totalorder %s23, 0
      %p107 = por %p105, %p106
      %p108 = scmp.ne.s32.totalorder %s96, %s97
      %p109 = scmp.eq.s32.totalorder %s24, 1
      %p110 = por %p108, %p109
      %p112 = scmp.ne.s32.totalorder %s97, %s111
      %p113 = scmp.eq.s32.totalorder %s24, 0
      %p114 = por %p112, %p113
      %s115 = ssub.s32 %s18, %s25
      %p116 = scmp.eq.s32.totalorder %s115, 0
      %s118 = sadd.s32 %s117, 1
      %s119 = scalar_select %p116, %s117, %s118
      %p122 = pneg %p116
      %p123 = scmp.eq.s32.totalorder %s18, 1
      %p124 = por %p122, %p123
      %p125 = scmp.ne.s32.totalorder %s117, %s120
      %p126 = scmp.eq.s32.totalorder %s18, 0
      %p127 = por %p125, %p126
      %p128 = scmp.ne.s32.totalorder %s117, %s120
      %p129 = scmp.eq.s32.totalorder %s23, 1
      %p130 = por %p128, %p129
      %p131 = scmp.ne.s32.totalorder %s120, %s121
      %p132 = scmp.eq.s32.totalorder %s23, 0
      %p133 = por %p131, %p132
      %p134 = scmp.ne.s32.totalorder %s120, %s121
      %p135 = scmp.eq.s32.totalorder %s24, 1
      %p136 = por %p134, %p135
      %p138 = scmp.ne.s32.totalorder %s121, %s137
      %p139 = scmp.eq.s32.totalorder %s24, 0
      %p140 = por %p138, %p139
      %p141 = scmp.le.s32.totalorder 1, %s18
      %p142 = scmp.lt.s32.totalorder %s18, 3
      %p143 = pnand %p141, %p142
      %p144 = pneg %p143
      // Predicated region
      $region9: #{tpu_custom_call.1} parent=5 // pred_check
        _
      $region10: #{tpu_custom_call.1} parent=5 // pred_check_branch
        %146 = sbr.rel (%p143) target = $region12
      $region11: #{tpu_custom_call.1} parent=5 // pred_region
        %s147 = ssub.s32 %s18, 1
        // Predicated region
        $region13: #{tpu_custom_call.1} parent=11 // pred_check
          %p148 = pneg %p65
        $region14: #{tpu_custom_call.1} parent=11 // pred_check_branch
          %150 = sbr.rel (%p148) target = $region16
        $region15: #{tpu_custom_call.1} parent=11 // pred_region
          %s152 = ssub.s32 64, 64
          %153 = vsyncadd [#allocation6], %s152
          %s155 = sshll.u32 [#allocation5], 4
          %s156 = int_to_ptr.vmem [resolvable:$true] %s155
          %158 = dma.hbm_to_vmem [thread:$0]  %s1, 64, %s156, [#allocation6]
        $region16: #{tpu_custom_call.1} parent=11 // pred_fallthru
          _
        // Predicated region
        $region17: #{tpu_custom_call.1} parent=11 // pred_check
          %p159 = pneg %p86
        $region18: #{tpu_custom_call.1} parent=11 // pred_check_branch
          %161 = sbr.rel (%p159) target = $region20
        $region19: #{tpu_custom_call.1} parent=11 // pred_region
          %s163 = ssub.s32 1024, 1024
          %164 = vsyncadd [#allocation6], %s163
          %s165 = sshll.u32 [#allocation7], 4
          %s166 = int_to_ptr.vmem [resolvable:$true] %s165
          %171 = dma.hbm_to_vmem [thread:$0]  %s2, 1024, %s166, [#allocation6], 64, 64, 4
        $region20: #{tpu_custom_call.1} parent=11 // pred_fallthru
          _
        // Predicated region
        $region21: #{tpu_custom_call.1} parent=11 // pred_check
          %p172 = pneg %p107
        $region22: #{tpu_custom_call.1} parent=11 // pred_check_branch
          %174 = sbr.rel (%p172) target = $region24
        $region23: #{tpu_custom_call.1} parent=11 // pred_region
          %s176 = ssub.s32 1024, 1024
          %177 = vsyncadd [#allocation9], %s176
          %s178 = sshll.u32 [#allocation8], 4
          %s179 = int_to_ptr.vmem [resolvable:$true] %s178
          %184 = dma.hbm_to_vmem [thread:$0]  %s3, 1024, %s179, [#allocation9], 64, 64, 4
        $region24: #{tpu_custom_call.1} parent=11 // pred_fallthru
          _
      $region12: #{tpu_custom_call.1} parent=5 // pred_fallthru
        _
      %p185 = scmp.lt.s32.totalorder %s18, 2
      // Predicated region
      $region25: #{tpu_custom_call.1} parent=5 // pred_check
        %p186 = pneg %p185
      $region26: #{tpu_custom_call.1} parent=5 // pred_check_branch
        %188 = sbr.rel (%p186) target = $region28
      $region27: #{tpu_custom_call.1} parent=5 // pred_region
        // Predicated region
        $region29: #{tpu_custom_call.1} parent=27 // pred_check
          %p189 = pneg %p38
        $region30: #{tpu_custom_call.1} parent=27 // pred_check_branch
          %191 = sbr.rel (%p189) target = $region32
        $region31: #{tpu_custom_call.1} parent=27 // pred_region
          %s192 = sand.u32 %s28, 1
          %s193 = scalar_lea.sflag [#allocation3], %s192
          %s194 = sand.u32 %s28, 1
          %s195 = smul.addr %s194, 8
          %s196 = scalar_lea.vmem [#allocation2], %s195
          %s198 = ssub.s32 128, 128
          %199 = vsyncadd %s193, %s198
          %s200 = smul.addr %s18, 128
          %s201 = scalar_lea.hbm %s0, %s200
          %s203 = sshll.u32 %s196, 4
          %s204 = int_to_ptr.vmem [resolvable:$true] %s203
          %206 = dma.hbm_to_vmem [thread:$0]  %s201, 128, %s204, %s193
        $region32: #{tpu_custom_call.1} parent=27 // pred_fallthru
          _
      $region28: #{tpu_custom_call.1} parent=5 // pred_fallthru
        _
      %p207 = scmp.le.s32.totalorder 1, %s18
      %p208 = scmp.lt.s32.totalorder %s18, 3
      %p209 = pnand %p207, %p208
      %p210 = pneg %p209
      // Predicated region
      $region33: #{tpu_custom_call.1} parent=5 // pred_check
        _
      $region34: #{tpu_custom_call.1} parent=5 // pred_check_branch
        %212 = sbr.rel (%p209) target = $region36
      $region35: #{tpu_custom_call.1} parent=5 // pred_region
        %s213 = ssub.s32 %s18, 1
        %s214 = sand.u32 %s31, 1
        %s215 = scalar_lea.sflag [#allocation3], %s214
        %s216 = sand.u32 %s31, 1
        %s217 = smul.addr %s216, 8
        %s218 = scalar_lea.vmem [#allocation2], %s217
        // Predicated region
        $region37: #{tpu_custom_call.1} parent=35 // pred_check
          %p219 = pneg %p44
        $region38: #{tpu_custom_call.1} parent=35 // pred_check_branch
          %221 = sbr.rel (%p219) target = $region40
        $region39: #{tpu_custom_call.1} parent=35 // pred_region
          %222 = dma.done %s215, 128
        $region40: #{tpu_custom_call.1} parent=35 // pred_fallthru
          _
        // Predicated region
        $region41: #{tpu_custom_call.1} parent=35 // pred_check
          %p223 = pneg %p65
        $region42: #{tpu_custom_call.1} parent=35 // pred_check_branch
          %225 = sbr.rel (%p223) target = $region44
        $region43: #{tpu_custom_call.1} parent=35 // pred_region
          %226 = dma.done [#allocation6], 64
        $region44: #{tpu_custom_call.1} parent=35 // pred_fallthru
          _
        // Predicated region
        $region45: #{tpu_custom_call.1} parent=35 // pred_check
          %p227 = pneg %p86
        $region46: #{tpu_custom_call.1} parent=35 // pred_check_branch
          %229 = sbr.rel (%p227) target = $region48
        $region47: #{tpu_custom_call.1} parent=35 // pred_region
          %230 = dma.done [#allocation6], 1024
        $region48: #{tpu_custom_call.1} parent=35 // pred_fallthru
          _
        // Predicated region
        $region49: #{tpu_custom_call.1} parent=35 // pred_check
          %p231 = pneg %p107
        $region50: #{tpu_custom_call.1} parent=35 // pred_check_branch
          %233 = sbr.rel (%p231) target = $region52
        $region51: #{tpu_custom_call.1} parent=35 // pred_region
          %234 = dma.done [#allocation9], 1024
        $region52: #{tpu_custom_call.1} parent=35 // pred_fallthru
          _
        %s235 = sand.u32 %s31, 1
        %s236 = scalar_lea.sflag [#allocation3], %s235
        %s237 = sand.u32 %s31, 1
        %s238 = smul.addr %s237, 8
        %s239 = scalar_lea.vmem [#allocation2], %s238
        %p240 = pneg %p44
        %p241 = pneg %p41
        %p242 = pneg %p65
        %p243 = pneg %p62
        %p244 = pneg %p86
        %p245 = pneg %p83
        %p246 = pneg %p107
        %p247 = pneg %p104
        %p248 = pneg %p133
        %p249 = pneg %p130
        %s250 = sand.u32 %s120, 1
        %s251 = scalar_lea.sflag [#allocation4], %s250
        %s252 = sand.u32 %s120, 1
        %s253 = smul.addr %s252, 8
        %s254 = scalar_lea.vmem [#allocation10], %s253
        %v256 = vld [vmem:[%s218] sm:$0xff]
        %v257 = vld [vmem:[#allocation5] sm:$0x1]
        %v258 = vld [vmem:[#allocation5 + $0x1] sm:$0x1]
        %v259 = vld [vmem:[#allocation5 + $0x2] sm:$0x1]
        %v260 = vld [vmem:[#allocation5 + $0x3] sm:$0x1]
        %v261 = vlaneseq
        %v262 = vand.u32 %v261, 127
        %vm263 = vcmp.lt.s32.totalorder %v262, 32
        %264 = vadd.xlane.f32.xlu0 %v256
        %v265 = vpop.xlane.xlu0 %264
        %v266 = vmul.f32 %v265, 0.03125
        %v267 = vsub.f32 %v256, %v266
        %v268 = vsel %vm263, %v267, 0.0
        %v269 = vmul.f32 %v268, %v268
        %270 = vadd.xlane.f32.xlu0 %v269
        %v271 = vpop.xlane.xlu0 %270
        %v272 = vmul.f32 %v271, 0.03125
        %v273 = vadd.f32 %v272, 1e-05
        %v274 = vrsqrt.pop %v273
        %v275 = vmul.f32 %v268, %v274
        %v276 = vlaneseq
        %v277 = vshrl.u32 %v276, 7
        %v278 = vsub.s32 0, %v277
        %v279 = vrot.slane %v257, %v278
        %v280 = vmul.f32 %v275, %v279
        %v281 = vlaneseq
        %v282 = vshrl.u32 %v281, 7
        %v283 = vsub.s32 0, %v282
        %v284 = vrot.slane %v258, %v283
        %v285 = vadd.f32 %v280, %v284
        %v286 = vpack.c.bf16 %v285, %v285
        %v287 = vld [vmem:[#allocation7] sm:$0xf]
        %v288 = vld [vmem:[#allocation7 + $0x4] sm:$0xf]
        %v289 = vld [vmem:[#allocation7 + $0x8] sm:$0xf]
        %v290 = vld [vmem:[#allocation7 + $0xc] sm:$0xf]
        %v291 = vld [vmem:[#allocation7 + $0x10] sm:$0xf]
        %v292 = vld [vmem:[#allocation7 + $0x14] sm:$0xf]
        %v293 = vld [vmem:[#allocation7 + $0x18] sm:$0xf]
        %v294 = vld [vmem:[#allocation7 + $0x1c] sm:$0xf]
        %v295 = vld [vmem:[#allocation7 + $0x20] sm:$0xf]
        %v296 = vld [vmem:[#allocation7 + $0x24] sm:$0xf]
        %v297 = vld [vmem:[#allocation7 + $0x28] sm:$0xf]
        %v298 = vld [vmem:[#allocation7 + $0x2c] sm:$0xf]
        %v299 = vld [vmem:[#allocation7 + $0x30] sm:$0xf]
        %v300 = vld [vmem:[#allocation7 + $0x34] sm:$0xf]
        %v301 = vld [vmem:[#allocation7 + $0x38] sm:$0xf]
        %v302 = vld [vmem:[#allocation7 + $0x3c] sm:$0xf]
        %v303 = vlaneseq
        %v304 = vshrl.u32 %v303, 7
        %v305 = vsub.s32 0, %v304
        %v306 = vrot.slane %v259, %v305
        %v323 = vunpack.c.l.b16 %v287
        %v324 = vunpack.c.l.b16 %v288
        %v325 = vunpack.c.l.b16 %v289
        %v326 = vunpack.c.l.b16 %v290
        %v327 = vunpack.c.l.b16 %v291
        %v328 = vunpack.c.l.b16 %v292
        %v329 = vunpack.c.l.b16 %v293
        %v330 = vunpack.c.l.b16 %v294
        %v331 = vunpack.c.l.b16 %v295
        %v332 = vunpack.c.l.b16 %v296
        %v333 = vunpack.c.l.b16 %v297
        %v334 = vunpack.c.l.b16 %v298
        %v335 = vunpack.c.l.b16 %v299
        %v336 = vunpack.c.l.b16 %v300
        %v337 = vunpack.c.l.b16 %v301
        %v338 = vunpack.c.l.b16 %v302
        %v339 = vpack.c.b16 %v324, %v323
        %v340 = vpack.c.b16 %v326, %v325
        %v341 = vpack.c.b16 %v328, %v327
        %v342 = vpack.c.b16 %v330, %v329
        %v343 = vpack.c.b16 %v332, %v331
        %v344 = vpack.c.b16 %v334, %v333
        %v345 = vpack.c.b16 %v336, %v335
        %v346 = vpack.c.b16 %v338, %v337
        %355 = vmatprep.subr.bf16.mxu0 0
        %356 = vmatpush1.bf16.msra.mxu0 %v339
        %357 = vmatprep.subr.bf16.mxu0 0
        %358 = vmatpush1.bf16.msra.mxu0 %v340
        %359 = vmatprep.subr.bf16.mxu0 0
        %360 = vmatpush1.bf16.msra.mxu0 %v341
        %361 = vmatprep.subr.bf16.mxu0 0
        %362 = vmatpush1.bf16.msra.mxu0 %v342
        %363 = vmatprep.subr.bf16.mxu0 0
        %364 = vmatpush1.bf16.msra.mxu0 %v343
        %365 = vmatprep.subr.bf16.mxu0 0
        %366 = vmatpush1.bf16.msra.mxu0 %v344
        %367 = vmatprep.subr.bf16.mxu0 0
        %368 = vmatpush1.bf16.msra.mxu0 %v345
        %369 = vmatprep.subr.bf16.mxu0 0
        %370 = vmatpush1.bf16.msra.mxu0 %v346
        %371 = vmatprep.subr.bf16.mxu0 0
        %372 = vmatpush1.bf16.msra.mxu0 0
        %373 = vmatprep.subr.bf16.mxu0 0
        %374 = vmatpush1.bf16.msra.mxu0 0
        %375 = vmatprep.subr.bf16.mxu0 0
        %376 = vmatpush1.bf16.msra.mxu0 0
        %377 = vmatprep.subr.bf16.mxu0 0
        %378 = vmatpush1.bf16.msra.mxu0 0
        %379 = vmatprep.subr.bf16.mxu0 0
        %380 = vmatpush1.bf16.msra.mxu0 0
        %381 = vmatprep.subr.bf16.mxu0 0
        %382 = vmatpush1.bf16.msra.mxu0 0
        %383 = vmatprep.subr.bf16.mxu0 0
        %384 = vmatpush1.bf16.msra.mxu0 0
        %385 = vmatprep.subr.bf16.mxu0 0
        %386 = vmatpush1.bf16.msra.mxu0 0
        %387 = vmatprep.mubr.bf16.mxu0 0
        %388 = vmatmul.mubr.bf16.gmra.mrb[0].mxu0 %v286
        %v389 = vpop.f32.mrb[0].mxu0
        %v390 = vadd.f32 %v306, %v389
        %v391 = vpop.f32.mrb[0].mxu0
        %v392 = vpop.f32.mrb[0].mxu0
        %v393 = vpop.f32.mrb[0].mxu0
        %394 = vdwg.mxu0
        %v395 = vmul.f32 %v390, 0.5
        %v396 = vmul.f32 %v390, 0.70710677
        %v397 = verf.f32.pop %v396
        %v398 = vadd.f32 %v397, 1.0
        %v399 = vmul.f32 %v395, %v398
        %v400 = vpack.c.bf16 %v399, %v399
        %v401 = vld [vmem:[#allocation8] sm:$0xf]
        %v402 = vld [vmem:[#allocation8 + $0x4] sm:$0xf]
        %v403 = vld [vmem:[#allocation8 + $0x8] sm:$0xf]
        %v404 = vld [vmem:[#allocation8 + $0xc] sm:$0xf]
        %v405 = vld [vmem:[#allocation8 + $0x10] sm:$0xf]
        %v406 = vld [vmem:[#allocation8 + $0x14] sm:$0xf]
        %v407 = vld [vmem:[#allocation8 + $0x18] sm:$0xf]
        %v408 = vld [vmem:[#allocation8 + $0x1c] sm:$0xf]
        %v409 = vld [vmem:[#allocation8 + $0x20] sm:$0xf]
        %v410 = vld [vmem:[#allocation8 + $0x24] sm:$0xf]
        %v411 = vld [vmem:[#allocation8 + $0x28] sm:$0xf]
        %v412 = vld [vmem:[#allocation8 + $0x2c] sm:$0xf]
        %v413 = vld [vmem:[#allocation8 + $0x30] sm:$0xf]
        %v414 = vld [vmem:[#allocation8 + $0x34] sm:$0xf]
        %v415 = vld [vmem:[#allocation8 + $0x38] sm:$0xf]
        %v416 = vld [vmem:[#allocation8 + $0x3c] sm:$0xf]
        %v417 = vlaneseq
        %v418 = vshrl.u32 %v417, 7
        %v419 = vsub.s32 0, %v418
        %v420 = vrot.slane %v260, %v419
        %v437 = vunpack.c.l.b16 %v401
        %v438 = vunpack.c.l.b16 %v402
        %v439 = vunpack.c.l.b16 %v403
        %v440 = vunpack.c.l.b16 %v404
        %v441 = vunpack.c.l.b16 %v405
        %v442 = vunpack.c.l.b16 %v406
        %v443 = vunpack.c.l.b16 %v407
        %v444 = vunpack.c.l.b16 %v408
        %v445 = vunpack.c.l.b16 %v409
        %v446 = vunpack.c.l.b16 %v410
        %v447 = vunpack.c.l.b16 %v411
        %v448 = vunpack.c.l.b16 %v412
        %v449 = vunpack.c.l.b16 %v413
        %v450 = vunpack.c.l.b16 %v414
        %v451 = vunpack.c.l.b16 %v415
        %v452 = vunpack.c.l.b16 %v416
        %v453 = vpack.c.b16 %v438, %v437
        %v454 = vpack.c.b16 %v440, %v439
        %v455 = vpack.c.b16 %v442, %v441
        %v456 = vpack.c.b16 %v444, %v443
        %v457 = vpack.c.b16 %v446, %v445
        %v458 = vpack.c.b16 %v448, %v447
        %v459 = vpack.c.b16 %v450, %v449
        %v460 = vpack.c.b16 %v452, %v451
        %469 = vmatprep.subr.bf16.mxu0 0
        %470 = vmatpush1.bf16.msra.mxu0 %v453
        %471 = vmatprep.subr.bf16.mxu0 0
        %472 = vmatpush1.bf16.msra.mxu0 %v454
        %473 = vmatprep.subr.bf16.mxu0 0
        %474 = vmatpush1.bf16.msra.mxu0 %v455
        %475 = vmatprep.subr.bf16.mxu0 0
        %476 = vmatpush1.bf16.msra.mxu0 %v456
        %477 = vmatprep.subr.bf16.mxu0 0
        %478 = vmatpush1.bf16.msra.mxu0 %v457
        %479 = vmatprep.subr.bf16.mxu0 0
        %480 = vmatpush1.bf16.msra.mxu0 %v458
        %481 = vmatprep.subr.bf16.mxu0 0
        %482 = vmatpush1.bf16.msra.mxu0 %v459
        %483 = vmatprep.subr.bf16.mxu0 0
        %484 = vmatpush1.bf16.msra.mxu0 %v460
        %485 = vmatprep.subr.bf16.mxu0 0
        %486 = vmatpush1.bf16.msra.mxu0 0
        %487 = vmatprep.subr.bf16.mxu0 0
        %488 = vmatpush1.bf16.msra.mxu0 0
        %489 = vmatprep.subr.bf16.mxu0 0
        %490 = vmatpush1.bf16.msra.mxu0 0
        %491 = vmatprep.subr.bf16.mxu0 0
        %492 = vmatpush1.bf16.msra.mxu0 0
        %493 = vmatprep.subr.bf16.mxu0 0
        %494 = vmatpush1.bf16.msra.mxu0 0
        %495 = vmatprep.subr.bf16.mxu0 0
        %496 = vmatpush1.bf16.msra.mxu0 0
        %497 = vmatprep.subr.bf16.mxu0 0
        %498 = vmatpush1.bf16.msra.mxu0 0
        %499 = vmatprep.subr.bf16.mxu0 0
        %500 = vmatpush1.bf16.msra.mxu0 0
        %501 = vmatprep.mubr.bf16.mxu0 0
        %502 = vmatmul.mubr.bf16.gmra.mrb[0].mxu0 %v400
        %v503 = vpop.f32.mrb[0].mxu0
        %v504 = vadd.f32 %v420, %v503
        %v505 = vpop.f32.mrb[0].mxu0
        %v506 = vpop.f32.mrb[0].mxu0
        %v507 = vpop.f32.mrb[0].mxu0
        %508 = vdwg.mxu0
        %v509 = vadd.f32 %v285, %v504
        %510 = vst [vmem:[%s254] sm:$0xff] %v509
        %s511 = sand.u32 %s120, 1
        %s512 = scalar_lea.sflag [#allocation4], %s511
        %s513 = sand.u32 %s120, 1
        %s514 = smul.addr %s513, 8
        %s515 = scalar_lea.vmem [#allocation10], %s514
        // Predicated region
        $region53: #{tpu_custom_call.1} parent=35 // pred_check
          %p516 = pneg %p130
        $region54: #{tpu_custom_call.1} parent=35 // pred_check_branch
          %518 = sbr.rel (%p516) target = $region56
        $region55: #{tpu_custom_call.1} parent=35 // pred_region
          %s520 = ssub.s32 128, 128
          %521 = vsyncadd %s512, %s520
          %s522 = smul.addr %s23, 128
          %s523 = scalar_lea.hbm %s4, %s522
          %s525 = sshll.u32 %s515, 4
          %s526 = int_to_ptr.vmem [resolvable:$true] %s525
          %528 = dma.vmem_to_hbm [thread:$0]  %s526, 128, %s523, %s512
        $region56: #{tpu_custom_call.1} parent=35 // pred_fallthru
          _
      $region36: #{tpu_custom_call.1} parent=5 // pred_fallthru
        _
      %p529 = scmp.le.s32.totalorder 2, %s18
      // Predicated region
      $region57: #{tpu_custom_call.1} parent=5 // pred_check
        %p530 = pneg %p529
      $region58: #{tpu_custom_call.1} parent=5 // pred_check_branch
        %532 = sbr.rel (%p530) target = $region60
      $region59: #{tpu_custom_call.1} parent=5 // pred_region
        %s533 = ssub.s32 %s18, 2
        // Predicated region
        $region61: #{tpu_custom_call.1} parent=59 // pred_check
          %p534 = pneg %p136
        $region62: #{tpu_custom_call.1} parent=59 // pred_check_branch
          %536 = sbr.rel (%p534) target = $region64
        $region63: #{tpu_custom_call.1} parent=59 // pred_region
          %s537 = sand.u32 %s121, 1
          %s538 = scalar_lea.sflag [#allocation4], %s537
          %s539 = sand.u32 %s121, 1
          %s540 = smul.addr %s539, 8
          %s541 = scalar_lea.vmem [#allocation10], %s540
          %542 = dma.done %s538, 128
        $region64: #{tpu_custom_call.1} parent=59 // pred_fallthru
          _
      $region60: #{tpu_custom_call.1} parent=5 // pred_fallthru
        _
    $region6: #{tpu_custom_call.1} parent=1 // loop_footer
      %s22 = sadd.s32 1, %s18
    $region7: #{tpu_custom_call.1} parent=1 // loop_footer_branch
      %17 = sbr.rel target = $region3
    $region8: #{tpu_custom_call.1} parent=1 // loop_exit
      _
    %543 = vsyncpa [#allocation3], 1
    %s544 = scalar_lea.sflag [#allocation3], 1
    %545 = vsyncpa %s544, 1
    %546 = vsyncpa [#allocation6], 1
    %547 = vsyncpa [#allocation9], 1
    %548 = vsyncpa [#allocation4], 1
    %s549 = scalar_lea.sflag [#allocation4], 1
    %550 = vsyncpa %s549, 1

</llo_original>
